<compile_context>
chip_gen: v5e
topology: v5e:2x2
jax: 0.10.0
libtpu: 0.0.40
codegen_flags: <defaults>
</compile_context>

<pallas_src>
import functools

import jax
import jax.numpy as jnp
from jax.experimental import pallas as pl
from jax.experimental.pallas import tpu as pltpu


def _round_up(x, m):
    return (x + m - 1) // m * m


def _cdiv(a, b):
    return (a + b - 1) // b


def _decoder_kernel(x_ref, w1_ref, b1_ref, w2_ref, b2_ref, w3_ref, b3_ref,
                    out_ref):
    """One (item-tile j, batch-tile i) grid step.

    The two small latent->hidden->hidden layers are recomputed per tile (cheap,
    hidden under the W3/out DMA); the W3 tile matmul + bias + tanh produce one
    lane-dense (tm, tn) output block.  No scratch, no cross-step dependency, so
    both grid axes are safe to mark "parallel".
    """
    h1 = jnp.tanh(
        jnp.dot(x_ref[...], w1_ref[...],
                preferred_element_type=jnp.float32) + b1_ref[...])
    h2 = jnp.tanh(
        jnp.dot(h1.astype(jnp.bfloat16), w2_ref[...],
                preferred_element_type=jnp.float32) + b2_ref[...])
    # TODO(synk): on v6e/v7x the final tanh could run in bf16 on the EUP if it
    # ever becomes the binding unit; kept f32 for accuracy / v5e compatibility.
    y = jnp.tanh(
        jnp.dot(h2.astype(jnp.bfloat16), w3_ref[...],
                preferred_element_type=jnp.float32) + b3_ref[...])
    out_ref[...] = y.astype(out_ref.dtype)


def prepare_decoder_weights(w1, b1, w2, b2, w3, b3, *, tn=2048):
    """Pad + cast the decoder weights once (hoisted out of the forward path).

    Wk: (in_features, out_features)  [i.e. nn.Linear .weight transposed]
    bk: (1, out_features)
    Returns a dict of padded/cast device arrays plus static geometry.
    """
    latent, hidden = w1.shape
    item = w3.shape[1]

    latent_p = _round_up(latent, 128)
    hidden_p = _round_up(hidden, 128)

    # Balance item tiles so the round-up waste stays below one 128-lane block
    # per tile (review: keep padding waste <~2-3%).
    item_p0 = _round_up(item, 128)
    tn = _round_up(min(tn, item_p0), 128)
    n_j = _cdiv(item_p0, tn)
    tn = _round_up(_cdiv(item_p0, n_j), 128)
    item_p = n_j * tn

    def pad2(a, rows, cols, dtype):
        a = jnp.asarray(a, dtype)
        return jnp.pad(a, ((0, rows - a.shape[0]), (0, cols - a.shape[1])))

    # Zero padding keeps the math exact: padded x cols / W rows are zero and
    # tanh(0) == 0, so padded hidden columns contribute nothing; padded item
    # columns are sliced off after the kernel.
    return {
        "w1": pad2(w1, latent_p, hidden_p, jnp.bfloat16),
        "b1": pad2(b1, 1, hidden_p, jnp.float32),
        "w2": pad2(w2, hidden_p, hidden_p, jnp.bfloat16),
        "b2": pad2(b2, 1, hidden_p, jnp.float32),
        "w3": pad2(w3, hidden_p, item_p, jnp.bfloat16),
        "b3": pad2(b3, 1, item_p, jnp.float32),
        "latent": latent,
        "item": item,
        "tn": tn,
    }


@functools.partial(jax.jit, static_argnames=("tm", "tn", "item", "out_dtype"))
def _decoder_pallas(x, w1_p, b1_p, w2_p, b2_p, w3_p, b3_p, *, tm, tn, item,
                    out_dtype):
    batch, latent = x.shape
    latent_p, hidden_p = w1_p.shape
    item_p = w3_p.shape[1]

    batch_p = _round_up(batch, tm)
    x_p = jnp.pad(x.astype(jnp.bfloat16),
                  ((0, batch_p - batch), (0, latent_p - latent)))

    grid = (item_p // tn, batch_p // tm)  # (j = item tiles OUTER, i = batch tiles INNER)

    out_p = pl.pallas_call(
        _decoder_kernel,
        out_shape=jax.ShapeDtypeStruct((batch_p, item_p), out_dtype),
        grid=grid,
        in_specs=[
            pl.BlockSpec((tm, latent_p), lambda j, i: (i, 0)),        # x (per batch tile)
            pl.BlockSpec((latent_p, hidden_p), lambda j, i: (0, 0)),  # W1 (resident)
            pl.BlockSpec((1, hidden_p), lambda j, i: (0, 0)),         # b1 (resident)
            pl.BlockSpec((hidden_p, hidden_p), lambda j, i: (0, 0)),  # W2 (resident)
            pl.BlockSpec((1, hidden_p), lambda j, i: (0, 0)),         # b2 (resident)
            pl.BlockSpec((hidden_p, tn), lambda j, i: (0, j)),        # W3 (streamed once: j is outer)
            pl.BlockSpec((1, tn), lambda j, i: (0, j)),               # b3 (streamed once)
        ],
        out_specs=pl.BlockSpec((tm, tn), lambda j, i: (i, j)),
        compiler_params=pltpu.CompilerParams(
            # No cross-step dependency -> both axes parallel; on v7x the long
            # item axis shards across the two TensorCores even at batch <= tm.
            dimension_semantics=("parallel", "parallel"),
            vmem_limit_bytes=48 * 1024 * 1024,
        ),
    )(x_p, w1_p, b1_p, w2_p, b2_p, w3_p, b3_p)

    if batch_p == batch and item_p == item:
        return out_p                      # fast path: no padding -> no extra copy
    return out_p[:batch, :item]


def multvae_decoder_forward(x, params, *, tm=256, out_dtype=jnp.float32):
    """x: (batch, latent_dim) f32. params: output of prepare_decoder_weights()."""
    batch = x.shape[0]
    # Clamp the batch tile to the (8-rounded) batch so small batches don't pay
    # for a 256-row tile; keep it a multiple of 8 (sublane rule).
    tm_eff = min(_round_up(tm, 8), _round_up(batch, 8))
    return _decoder_pallas(
        x, params["w1"], params["b1"], params["w2"], params["b2"],
        params["w3"], params["b3"],
        tm=tm_eff, tn=params["tn"], item=params["item"], out_dtype=out_dtype)


def _init_linear(key, in_features, out_features):
    # Matches torch.nn.Linear default init: U(-1/sqrt(in), 1/sqrt(in)).
    kw, kb = jax.random.split(key)
    bound = 1.0 / jnp.sqrt(jnp.float32(in_features))
    w = jax.random.uniform(kw, (in_features, out_features), jnp.float32,
                           minval=-bound, maxval=bound)
    b = jax.random.uniform(kb, (1, out_features), jnp.float32,
                           minval=-bound, maxval=bound)
    return w, b


def _reference_forward_bf16(x, w1, b1, w2, b2, w3, b3):
    # Reference with the same bf16 rounding the kernel applies at MXU inputs,
    # exact-precision dots, f32 bias/tanh -> tight tolerance check.
    rd = lambda a: a.astype(jnp.bfloat16).astype(jnp.float32)
    dot = lambda a, b: jnp.dot(a, b, precision=jax.lax.Precision.HIGHEST)
    h = jnp.tanh(dot(rd(x), rd(w1)) + b1)
    h = jnp.tanh(dot(rd(h), rd(w2)) + b2)
    return jnp.tanh(dot(rd(h), rd(w3)) + b3)


if __name__ == "__main__":
    # Small shapes consistent with the module's forward: x is (batch, latent_dim).
    # item_dim deliberately not a multiple of the tile and batch not a multiple
    # of tm, so padding, W3 streaming and multi-tile batches are all exercised.
    batch = 20
    latent_dim = 32
    hidden_dim = 64
    item_dim = 300

    key = jax.random.PRNGKey(0)
    kx, k1, k2, k3 = jax.random.split(key, 4)

    x = jax.random.normal(kx, (batch, latent_dim), jnp.float32)
    w1, b1 = _init_linear(k1, latent_dim, hidden_dim)   # linear_dec_1
    w2, b2 = _init_linear(k2, hidden_dim, hidden_dim)   # hidden_dec_1
    w3, b3 = _init_linear(k3, hidden_dim, item_dim)     # item_layer

    ref = _reference_forward_bf16(x, w1, b1, w2, b2, w3, b3)

    # 1) Multi-tile config: 3 item tiles x 3 batch tiles (tn=128, tm=8).
    params_small = prepare_decoder_weights(w1, b1, w2, b2, w3, b3, tn=128)
    out = jax.block_until_ready(multvae_decoder_forward(x, params_small, tm=8))
    assert out.shape == (batch, item_dim)
    assert out.dtype == jnp.float32
    assert jnp.allclose(out, ref, atol=5e-3, rtol=5e-3), "mismatch (tiled path)"

    # 2) Default config: tm/tn clamp down to a single-tile grid.
    params_def = prepare_decoder_weights(w1, b1, w2, b2, w3, b3)
    out2 = jax.block_until_ready(multvae_decoder_forward(x, params_def))
    assert out2.shape == (batch, item_dim)
    assert jnp.allclose(out2, ref, atol=5e-3, rtol=5e-3), "mismatch (default path)"

    print("KERNEL_OK")
</pallas_src>

<mosaic_0001>
module attributes {stable_mosaic.version = 11 : i64} {
  func.func @_decoder_kernel(%arg0: i32, %arg1: i32, %arg2: memref<8x128xbf16, #tpu.memory_space<vmem>>, %arg3: memref<128x128xbf16, #tpu.memory_space<vmem>>, %arg4: memref<1x128xf32, #tpu.memory_space<vmem>>, %arg5: memref<128x128xbf16, #tpu.memory_space<vmem>>, %arg6: memref<1x128xf32, #tpu.memory_space<vmem>>, %arg7: memref<128x128xbf16, #tpu.memory_space<vmem>>, %arg8: memref<1x128xf32, #tpu.memory_space<vmem>>, %arg9: memref<8x128xf32, #tpu.memory_space<vmem>>) attributes {dimension_semantics = [#tpu.dimension_semantics<parallel>, #tpu.dimension_semantics<parallel>], iteration_bounds = array<i64: 3, 3>, scalar_prefetch = 0 : i64, scratch_operands = 0 : i64, tpu.core_type = #tpu.core_type<tc>, window_params = [{transform_indices = @transform_0, window_bounds = array<i64: 8, 128>}, {pipeline_mode = #tpu.pipeline_mode<synchronous>, transform_indices = @transform_1, window_bounds = array<i64: 128, 128>}, {pipeline_mode = #tpu.pipeline_mode<synchronous>, transform_indices = @transform_2, window_bounds = array<i64: 1, 128>}, {pipeline_mode = #tpu.pipeline_mode<synchronous>, transform_indices = @transform_3, window_bounds = array<i64: 128, 128>}, {pipeline_mode = #tpu.pipeline_mode<synchronous>, transform_indices = @transform_4, window_bounds = array<i64: 1, 128>}, {transform_indices = @transform_5, window_bounds = array<i64: 128, 128>}, {transform_indices = @transform_6, window_bounds = array<i64: 1, 128>}, {transform_indices = @transform_7, window_bounds = array<i64: 8, 128>}]} {
    %c0 = arith.constant 0 : index
    %c0_0 = arith.constant 0 : index
    %0 = vector.load %arg2[%c0, %c0_0] : memref<8x128xbf16, #tpu.memory_space<vmem>>, vector<8x128xbf16>
    %c0_1 = arith.constant 0 : index
    %c0_2 = arith.constant 0 : index
    %1 = vector.load %arg3[%c0_1, %c0_2] : memref<128x128xbf16, #tpu.memory_space<vmem>>, vector<128x128xbf16>
    %cst = arith.constant dense<0.000000e+00> : vector<8x128xf32>
    %2 = tpu.matmul %0, %1, %cst {dimension_numbers = #tpu.dot_dimension_numbers<[1], [0], [0], [1], [0, 0, 1, 1], [], []>} : vector<8x128xbf16>, vector<128x128xbf16>, vector<8x128xf32> -> vector<8x128xf32>
    %c0_3 = arith.constant 0 : index
    %c0_4 = arith.constant 0 : index
    %3 = vector.load %arg4[%c0_3, %c0_4] : memref<1x128xf32, #tpu.memory_space<vmem>>, vector<1x128xf32>
    %4 = vector.broadcast %3 : vector<1x128xf32> to vector<8x128xf32>
    %5 = arith.addf %2, %4 : vector<8x128xf32>
    %6 = math.tanh %5 : vector<8x128xf32>
    %7 = arith.truncf %6 : vector<8x128xf32> to vector<8x128xbf16>
    %c0_5 = arith.constant 0 : index
    %c0_6 = arith.constant 0 : index
    %8 = vector.load %arg5[%c0_5, %c0_6] : memref<128x128xbf16, #tpu.memory_space<vmem>>, vector<128x128xbf16>
    %cst_7 = arith.constant dense<0.000000e+00> : vector<8x128xf32>
    %9 = tpu.matmul %7, %8, %cst_7 {dimension_numbers = #tpu.dot_dimension_numbers<[1], [0], [0], [1], [0, 0, 1, 1], [], []>} : vector<8x128xbf16>, vector<128x128xbf16>, vector<8x128xf32> -> vector<8x128xf32>
    %c0_8 = arith.constant 0 : index
    %c0_9 = arith.constant 0 : index
    %10 = vector.load %arg6[%c0_8, %c0_9] : memref<1x128xf32, #tpu.memory_space<vmem>>, vector<1x128xf32>
    %11 = vector.broadcast %10 : vector<1x128xf32> to vector<8x128xf32>
    %12 = arith.addf %9, %11 : vector<8x128xf32>
    %13 = math.tanh %12 : vector<8x128xf32>
    %14 = arith.truncf %13 : vector<8x128xf32> to vector<8x128xbf16>
    %c0_10 = arith.constant 0 : index
    %c0_11 = arith.constant 0 : index
    %15 = vector.load %arg7[%c0_10, %c0_11] : memref<128x128xbf16, #tpu.memory_space<vmem>>, vector<128x128xbf16>
    %cst_12 = arith.constant dense<0.000000e+00> : vector<8x128xf32>
    %16 = tpu.matmul %14, %15, %cst_12 {dimension_numbers = #tpu.dot_dimension_numbers<[1], [0], [0], [1], [0, 0, 1, 1], [], []>} : vector<8x128xbf16>, vector<128x128xbf16>, vector<8x128xf32> -> vector<8x128xf32>
    %c0_13 = arith.constant 0 : index
    %c0_14 = arith.constant 0 : index
    %17 = vector.load %arg8[%c0_13, %c0_14] : memref<1x128xf32, #tpu.memory_space<vmem>>, vector<1x128xf32>
    %18 = vector.broadcast %17 : vector<1x128xf32> to vector<8x128xf32>
    %19 = arith.addf %16, %18 : vector<8x128xf32>
    %20 = math.tanh %19 : vector<8x128xf32>
    %c0_15 = arith.constant 0 : index
    %c0_16 = arith.constant 0 : index
    %21 = vector.load %arg9[%c0_15, %c0_16] : memref<8x128xf32, #tpu.memory_space<vmem>>, vector<8x128xf32>
    tpu.vector_store %arg9[%c0_15, %c0_16], %20 {strides = array<i32>} : memref<8x128xf32, #tpu.memory_space<vmem>>, vector<8x128xf32>,
    return
  }
  func.func @transform_0(%arg0: i32, %arg1: i32) -> (i32, i32) {
    %c0_i32 = arith.constant 0 : i32
    %c0_i32_0 = arith.constant 0 : i32
    return %arg1, %c0_i32 : i32, i32
  }
  func.func @transform_1(%arg0: i32, %arg1: i32) -> (i32, i32) {
    %c0_i32 = arith.constant 0 : i32
    %c0_i32_0 = arith.constant 0 : i32
    %c0_i32_1 = arith.constant 0 : i32
    return %c0_i32, %c0_i32_0 : i32, i32
  }
  func.func @transform_2(%arg0: i32, %arg1: i32) -> (i32, i32) {
    %c0_i32 = arith.constant 0 : i32
    %c0_i32_0 = arith.constant 0 : i32
    %c0_i32_1 = arith.constant 0 : i32
    return %c0_i32, %c0_i32_0 : i32, i32
  }
  func.func @transform_3(%arg0: i32, %arg1: i32) -> (i32, i32) {
    %c0_i32 = arith.constant 0 : i32
    %c0_i32_0 = arith.constant 0 : i32
    %c0_i32_1 = arith.constant 0 : i32
    return %c0_i32, %c0_i32_0 : i32, i32
  }
  func.func @transform_4(%arg0: i32, %arg1: i32) -> (i32, i32) {
    %c0_i32 = arith.constant 0 : i32
    %c0_i32_0 = arith.constant 0 : i32
    %c0_i32_1 = arith.constant 0 : i32
    return %c0_i32, %c0_i32_0 : i32, i32
  }
  func.func @transform_5(%arg0: i32, %arg1: i32) -> (i32, i32) {
    %c0_i32 = arith.constant 0 : i32
    %c0_i32_0 = arith.constant 0 : i32
    return %c0_i32, %arg0 : i32, i32
  }
  func.func @transform_6(%arg0: i32, %arg1: i32) -> (i32, i32) {
    %c0_i32 = arith.constant 0 : i32
    %c0_i32_0 = arith.constant 0 : i32
    return %c0_i32, %arg0 : i32, i32
  }
  func.func @transform_7(%arg0: i32, %arg1: i32) -> (i32, i32) {
    %c0_i32 = arith.constant 0 : i32
    return %arg1, %arg0 : i32, i32
  }
}

</mosaic_0001>

<llo_original>
// kernel: _decoder_pallas.1
$region0: #{_decoder_pallas.1}
  #allocation0 [shape = 'u32[]', space=smem, size = 0x4, offset = 0x4, fixed_abs, tag = 'smem constant byte address 0x4 - core index']
  #allocation1 [shape = 'u32[72,128]{1,0:T(1,128)}', space=vmem, size = 0x9000, scoped, tag = 'internal scratch']
  %s0 = inlined_call_operand.vmem [shape: bf16[24,128], index: 0, kind: input, shape index: {}]
  %s1 = inlined_call_operand.hbm [shape: bf16[128,128], index: 1, kind: input, shape index: {}]
  %s2 = inlined_call_operand.vmem [shape: f32[1,128], index: 2, kind: input, shape index: {}]
  %s3 = inlined_call_operand.hbm [shape: bf16[128,128], index: 3, kind: input, shape index: {}]
  %s4 = inlined_call_operand.vmem [shape: f32[1,128], index: 4, kind: input, shape index: {}]
  %s5 = inlined_call_operand.hbm [shape: bf16[128,384], index: 5, kind: input, shape index: {}]
  %s6 = inlined_call_operand.vmem [shape: f32[1,384], index: 6, kind: input, shape index: {}]
  %s7 = inlined_call_operand.hbm [shape: f32[24,384], index: 7, kind: output, shape index: {}]
  %s8 = sld [smem:[#allocation0]]
  $region73: #{_decoder_pallas.1} parent=0
    _
  %s10 = ssub.s32 1, %s8
  %s11 = scalar_select 0, %s10, %s8
  $region1: #{_decoder_pallas.1} parent=0
    #allocation2 [shape = 'u8[32768]{0}', space=vmem, size = 0x8000, scoped, tag = 'input window, operand 1, single buffered']
    #allocation3 [shape = 's32[2]{0}', space=sflag, size = 0x8, scoped, tag = 'scoped memory for _decoder_pallas.1']
    #allocation4 [shape = 's32[2]{0}', space=sflag, size = 0x8, scoped, tag = 'scoped memory for _decoder_pallas.1']
    #allocation5 [shape = 'u8[32768]{0}', space=vmem, size = 0x8000, scoped, tag = 'input window, operand 3, single buffered']
    #allocation6 [shape = 's32[1]{0}', space=sflag, size = 0x4, scoped, tag = 'scoped memory for _decoder_pallas.1']
    #allocation7 [shape = 'u8[65536]{0}', space=vmem, size = 0x10000, scoped, tag = 'input window, operand 5']
    #allocation8 [shape = 'u8[8192]{0}', space=vmem, size = 0x2000, scoped, tag = 'output window, operand 0']
    %12 = vsyncpa [#allocation3], 0
    %13 = vsyncpa [#allocation6], 0
    %14 = vsyncpa [#allocation4], 0
    %s15 = scalar_lea.sflag [#allocation4], 1
    %16 = vsyncpa %s15, 0
    loop: start=0, step=1, limit=11
    $region2: #{_decoder_pallas.1} parent=1 // loop_pre_header
      _
    $region3: #{_decoder_pallas.1} parent=1 // loop_header
      %s18 = sphi 0, %s22
      %p19 = scmp.ge.s32.totalorder %s18, 11
      %s25 = sphi 0, %s37
      %s26 = sphi 0, %s33
      %s27 = sphi 0, %s25
      %s28 = sphi 0, %s26
      %s29 = sphi 0, %s27
      %s30 = sphi 0, %s28
      %s40 = sphi 0, %s42
      %s43 = sphi 0, %s40
      %s44 = sphi 0, %s43
      %s60 = sphi 0, %s44
      %s64 = sphi 0, %s64
      %s66 = sphi 0, %s64
      %s67 = sphi 0, %s66
      %s81 = sphi 0, %s67
      %s85 = sphi 0, %s85
      %s87 = sphi 0, %s85
      %s88 = sphi 0, %s87
      %s102 = sphi 0, %s88
      %s106 = sphi 0, %s106
      %s108 = sphi 0, %s106
      %s109 = sphi 0, %s108
      %s123 = sphi 0, %s109
      %s127 = sphi 0, %s127
      %s129 = sphi 0, %s127
      %s130 = sphi 0, %s129
      %s144 = sphi 0, %s130
      %s150 = sphi 0, %s152
      %s153 = sphi 0, %s150
      %s154 = sphi 0, %s153
      %s170 = sphi 0, %s154
      %s176 = sphi 0, %s178
      %s179 = sphi 0, %s176
      %s180 = sphi 0, %s179
      %s196 = sphi 0, %s180
      %s204 = sphi 0, %s206
      %s207 = sphi 0, %s204
      %s208 = sphi 0, %s207
      %s224 = sphi 0, %s208
    $region4: #{_decoder_pallas.1} parent=1 // loop_header_branch
      %21 = sbr.rel (%p19) target = $region8
    $region5: #{_decoder_pallas.1} parent=1 // loop_body
      %s23 = ssub.s32 %s18, 1
      %s24 = ssub.s32 %s18, 2
      %s31 = sadd.s32 1, %s26
      %p32 = scmp.ge.s32.totalorder %s31, 3
      %s33 = scalar_select %p32, 0, %s31
      %s34 = sadd.s32 1, %s25
      %s35 = scalar_select %p32, %s34, %s25
      %p36 = scmp.ge.s32.totalorder %s35, 3
      %s37 = scalar_select %p36, 0, %s35
      %s38 = ssub.s32 %s26, %s33
      %p39 = scmp.eq.s32.totalorder %s38, 0
      %s41 = sadd.s32 %s40, 1
      %s42 = scalar_select %p39, %s40, %s41
      %p45 = pneg %p39
      %p46 = scmp.eq.s32.totalorder %s18, 8
      %p47 = por %p45, %p46
      %p48 = scmp.ne.s32.totalorder %s40, %s43
      %p49 = scmp.eq.s32.totalorder %s18, 0
      %p50 = por %p48, %p49
      %p51 = scmp.ne.s32.totalorder %s40, %s43
      %p52 = scmp.eq.s32.totalorder %s23, 8
      %p53 = por %p51, %p52
      %p54 = scmp.ne.s32.totalorder %s43, %s44
      %p55 = scmp.eq.s32.totalorder %s23, 0
      %p56 = por %p54, %p55
      %p57 = scmp.ne.s32.totalorder %s43, %s44
      %p58 = scmp.eq.s32.totalorder %s24, 8
      %p59 = por %p57, %p58
      %p61 = scmp.ne.s32.totalorder %s44, %s60
      %p62 = scmp.eq.s32.totalorder %s24, 0
      %p63 = por %p61, %p62
      %s65 = sadd.s32 %s64, 1
      %p68 = scmp.eq.s32.totalorder %s18, 8
      %p69 = scmp.ne.s32.totalorder %s64, %s66
      %p70 = scmp.eq.s32.totalorder %s18, 0
      %p71 = por %p69, %p70
      %p72 = scmp.ne.s32.totalorder %s64, %s66
      %p73 = scmp.eq.s32.totalorder %s23, 8
      %p74 = por %p72, %p73
      %p75 = scmp.ne.s32.totalorder %s66, %s67
      %p76 = scmp.eq.s32.totalorder %s23, 0
      %p77 = por %p75, %p76
      %p78 = scmp.ne.s32.totalorder %s66, %s67
      %p79 = scmp.eq.s32.totalorder %s24, 8
      %p80 = por %p78, %p79
      %p82 = scmp.ne.s32.totalorder %s67, %s81
      %p83 = scmp.eq.s32.totalorder %s24, 0
      %p84 = por %p82, %p83
      %s86 = sadd.s32 %s85, 1
      %p89 = scmp.eq.s32.totalorder %s18, 8
      %p90 = scmp.ne.s32.totalorder %s85, %s87
      %p91 = scmp.eq.s32.totalorder %s18, 0
      %p92 = por %p90, %p91
      %p93 = scmp.ne.s32.totalorder %s85, %s87
      %p94 = scmp.eq.s32.totalorder %s23, 8
      %p95 = por %p93, %p94
      %p96 = scmp.ne.s32.totalorder %s87, %s88
      %p97 = scmp.eq.s32.totalorder %s23, 0
      %p98 = por %p96, %p97
      %p99 = scmp.ne.s32.totalorder %s87, %s88
      %p100 = scmp.eq.s32.totalorder %s24, 8
      %p101 = por %p99, %p100
      %p103 = scmp.ne.s32.totalorder %s88, %s102
      %p104 = scmp.eq.s32.totalorder %s24, 0
      %p105 = por %p103, %p104
      %s107 = sadd.s32 %s106, 1
      %p110 = scmp.eq.s32.totalorder %s18, 8
      %p111 = scmp.ne.s32.totalorder %s106, %s108
      %p112 = scmp.eq.s32.totalorder %s18, 0
      %p113 = por %p111, %p112
      %p114 = scmp.ne.s32.totalorder %s106, %s108
      %p115 = scmp.eq.s32.totalorder %s23, 8
      %p116 = por %p114, %p115
      %p117 = scmp.ne.s32.totalorder %s108, %s109
      %p118 = scmp.eq.s32.totalorder %s23, 0
      %p119 = por %p117, %p118
      %p120 = scmp.ne.s32.totalorder %s108, %s109
      %p121 = scmp.eq.s32.totalorder %s24, 8
      %p122 = por %p120, %p121
      %p124 = scmp.ne.s32.totalorder %s109, %s123
      %p125 = scmp.eq.s32.totalorder %s24, 0
      %p126 = por %p124, %p125
      %s128 = sadd.s32 %s127, 1
      %p131 = scmp.eq.s32.totalorder %s18, 8
      %p132 = scmp.ne.s32.totalorder %s127, %s129
      %p133 = scmp.eq.s32.totalorder %s18, 0
      %p134 = por %p132, %p133
      %p135 = scmp.ne.s32.totalorder %s127, %s129
      %p136 = scmp.eq.s32.totalorder %s23, 8
      %p137 = por %p135, %p136
      %p138 = scmp.ne.s32.totalorder %s129, %s130
      %p139 = scmp.eq.s32.totalorder %s23, 0
      %p140 = por %p138, %p139
      %p141 = scmp.ne.s32.totalorder %s129, %s130
      %p142 = scmp.eq.s32.totalorder %s24, 8
      %p143 = por %p141, %p142
      %p145 = scmp.ne.s32.totalorder %s130, %s144
      %p146 = scmp.eq.s32.totalorder %s24, 0
      %p147 = por %p145, %p146
      %s148 = ssub.s32 %s25, %s37
      %p149 = scmp.eq.s32.totalorder %s148, 0
      %s151 = sadd.s32 %s150, 1
      %s152 = scalar_select %p149, %s150, %s151
      %p155 = pneg %p149
      %p156 = scmp.eq.s32.totalorder %s18, 8
      %p157 = por %p155, %p156
      %p158 = scmp.ne.s32.totalorder %s150, %s153
      %p159 = scmp.eq.s32.totalorder %s18, 0
      %p160 = por %p158, %p159
      %p161 = scmp.ne.s32.totalorder %s150, %s153
      %p162 = scmp.eq.s32.totalorder %s23, 8
      %p163 = por %p161, %p162
      %p164 = scmp.ne.s32.totalorder %s153, %s154
      %p165 = scmp.eq.s32.totalorder %s23, 0
      %p166 = por %p164, %p165
      %p167 = scmp.ne.s32.totalorder %s153, %s154
      %p168 = scmp.eq.s32.totalorder %s24, 8
      %p169 = por %p167, %p168
      %p171 = scmp.ne.s32.totalorder %s154, %s170
      %p172 = scmp.eq.s32.totalorder %s24, 0
      %p173 = por %p171, %p172
      %s174 = ssub.s32 %s25, %s37
      %p175 = scmp.eq.s32.totalorder %s174, 0
      %s177 = sadd.s32 %s176, 1
      %s178 = scalar_select %p175, %s176, %s177
      %p181 = pneg %p175
      %p182 = scmp.eq.s32.totalorder %s18, 8
      %p183 = por %p181, %p182
      %p184 = scmp.ne.s32.totalorder %s176, %s179
      %p185 = scmp.eq.s32.totalorder %s18, 0
      %p186 = por %p184, %p185
      %p187 = scmp.ne.s32.totalorder %s176, %s179
      %p188 = scmp.eq.s32.totalorder %s23, 8
      %p189 = por %p187, %p188
      %p190 = scmp.ne.s32.totalorder %s179, %s180
      %p191 = scmp.eq.s32.totalorder %s23, 0
      %p192 = por %p190, %p191
      %p193 = scmp.ne.s32.totalorder %s179, %s180
      %p194 = scmp.eq.s32.totalorder %s24, 8
      %p195 = por %p193, %p194
      %p197 = scmp.ne.s32.totalorder %s180, %s196
      %p198 = scmp.eq.s32.totalorder %s24, 0
      %p199 = por %p197, %p198
      %s200 = ssub.s32 %s26, %s33
      %s201 = ssub.s32 %s25, %s37
      %s202 = sor.u32 %s200, %s201
      %p203 = scmp.eq.s32.totalorder %s202, 0
      %s205 = sadd.s32 %s204, 1
      %s206 = scalar_select %p203, %s204, %s205
      %p209 = pneg %p203
      %p210 = scmp.eq.s32.totalorder %s18, 8
      %p211 = por %p209, %p210
      %p212 = scmp.ne.s32.totalorder %s204, %s207
      %p213 = scmp.eq.s32.totalorder %s18, 0
      %p214 = por %p212, %p213
      %p215 = scmp.ne.s32.totalorder %s204, %s207
      %p216 = scmp.eq.s32.totalorder %s23, 8
      %p217 = por %p215, %p216
      %p218 = scmp.ne.s32.totalorder %s207, %s208
      %p219 = scmp.eq.s32.totalorder %s23, 0
      %p220 = por %p218, %p219
      %p221 = scmp.ne.s32.totalorder %s207, %s208
      %p222 = scmp.eq.s32.totalorder %s24, 8
      %p223 = por %p221, %p222
      %p225 = scmp.ne.s32.totalorder %s208, %s224
      %p226 = scmp.eq.s32.totalorder %s24, 0
      %p227 = por %p225, %p226
      %p228 = scmp.le.s32.totalorder 1, %s18
      %p229 = scmp.lt.s32.totalorder %s18, 10
      %p230 = pnand %p228, %p229
      %p231 = pneg %p230
      // Predicated region
      $region9: #{_decoder_pallas.1} parent=5 // pred_check
        _
      $region10: #{_decoder_pallas.1} parent=5 // pred_check_branch
        %233 = sbr.rel (%p230) target = $region12
      $region11: #{_decoder_pallas.1} parent=5 // pred_region
        %s234 = ssub.s32 %s18, 1
        // Predicated region
        $region13: #{_decoder_pallas.1} parent=11 // pred_check
          %p235 = pneg %p77
        $region14: #{_decoder_pallas.1} parent=11 // pred_check_branch
          %237 = sbr.rel (%p235) target = $region16
        $region15: #{_decoder_pallas.1} parent=11 // pred_region
          %239 = vsyncadd [#allocation3], 0
          %s240 = sshll.u32 %s1, 4
          %s241 = int_to_ptr.hbm [resolvable:$true] %s240
          %s242 = sshll.u32 [#allocation2], 4
          %s243 = int_to_ptr.vmem [resolvable:$true] %s242
          %248 = dma.hbm_to_vmem [thread:$0]  %s241, 1024, %s243, [#allocation3], 64, 64, 4
        $region16: #{_decoder_pallas.1} parent=11 // pred_fallthru
          _
        // Predicated region
        $region17: #{_decoder_pallas.1} parent=11 // pred_check
          %p249 = pneg %p98
        $region18: #{_decoder_pallas.1} parent=11 // pred_check_branch
          %251 = sbr.rel (%p249) target = $region20
        $region19: #{_decoder_pallas.1} parent=11 // pred_region
          _
        $region20: #{_decoder_pallas.1} parent=11 // pred_fallthru
          _
        // Predicated region
        $region21: #{_decoder_pallas.1} parent=11 // pred_check
          %p252 = pneg %p119
        $region22: #{_decoder_pallas.1} parent=11 // pred_check_branch
          %254 = sbr.rel (%p252) target = $region24
        $region23: #{_decoder_pallas.1} parent=11 // pred_region
          %256 = vsyncadd [#allocation6], 0
          %s257 = sshll.u32 %s3, 4
          %s258 = int_to_ptr.hbm [resolvable:$true] %s257
          %s259 = sshll.u32 [#allocation5], 4
          %s260 = int_to_ptr.vmem [resolvable:$true] %s259
          %265 = dma.hbm_to_vmem [thread:$0]  %s258, 1024, %s260, [#allocation6], 64, 64, 4
        $region24: #{_decoder_pallas.1} parent=11 // pred_fallthru
          _
        // Predicated region
        $region25: #{_decoder_pallas.1} parent=11 // pred_check
          %p266 = pneg %p140
        $region26: #{_decoder_pallas.1} parent=11 // pred_check_branch
          %268 = sbr.rel (%p266) target = $region28
        $region27: #{_decoder_pallas.1} parent=11 // pred_region
          _
        $region28: #{_decoder_pallas.1} parent=11 // pred_fallthru
          _
      $region12: #{_decoder_pallas.1} parent=5 // pred_fallthru
        _
      %p269 = scmp.lt.s32.totalorder %s18, 9
      // Predicated region
      $region29: #{_decoder_pallas.1} parent=5 // pred_check
        %p270 = pneg %p269
      $region30: #{_decoder_pallas.1} parent=5 // pred_check_branch
        %272 = sbr.rel (%p270) target = $region32
      $region31: #{_decoder_pallas.1} parent=5 // pred_region
        // Predicated region
        $region33: #{_decoder_pallas.1} parent=31 // pred_check
          %p273 = pneg %p50
        $region34: #{_decoder_pallas.1} parent=31 // pred_check_branch
          %275 = sbr.rel (%p273) target = $region36
        $region35: #{_decoder_pallas.1} parent=31 // pred_region
          %p276 = scmp.lt.s32.totalorder %s26, 2
          %s277 = scalar_select %p276, %s26, 2
          %s278 = smul.addr %s277, 4
          %s279 = scalar_lea.vmem %s0, %s278
        $region36: #{_decoder_pallas.1} parent=31 // pred_fallthru
          _
        // Predicated region
        $region37: #{_decoder_pallas.1} parent=31 // pred_check
          %p280 = pneg %p160
        $region38: #{_decoder_pallas.1} parent=31 // pred_check_branch
          %282 = sbr.rel (%p280) target = $region40
        $region39: #{_decoder_pallas.1} parent=31 // pred_region
          %s283 = sand.u32 %s18, 1
          %s284 = scalar_lea.sflag [#allocation3], %s283
          %s285 = sand.u32 %s150, 1
          %s286 = smul.addr %s285, 64
          %s287 = scalar_lea.vmem [#allocation7], %s286
          %289 = vsyncadd %s284, 0
          %s290 = smul.addr %s25, 4
          %s291 = scalar_lea.hbm %s5, %s290
          %s292 = sshll.u32 %s291, 4
          %s293 = int_to_ptr.hbm [resolvable:$true] %s292
          %s294 = sshll.u32 %s287, 4
          %s295 = int_to_ptr.vmem [resolvable:$true] %s294
          %300 = dma.hbm_to_vmem [thread:$0]  %s293, 1024, %s295, %s284, 192, 64, 4
        $region40: #{_decoder_pallas.1} parent=31 // pred_fallthru
          _
        // Predicated region
        $region41: #{_decoder_pallas.1} parent=31 // pred_check
          %p301 = pneg %p186
        $region42: #{_decoder_pallas.1} parent=31 // pred_check_branch
          %303 = sbr.rel (%p301) target = $region44
        $region43: #{_decoder_pallas.1} parent=31 // pred_region
          %p304 = scmp.lt.s32.totalorder %s25, 2
          %s305 = scalar_select %p304, %s25, 2
          %s306 = scalar_lea.vmem %s6, %s305
        $region44: #{_decoder_pallas.1} parent=31 // pred_fallthru
          _
      $region32: #{_decoder_pallas.1} parent=5 // pred_fallthru
        _
      %p307 = scmp.le.s32.totalorder 1, %s18
      %p308 = scmp.lt.s32.totalorder %s18, 10
      %p309 = pnand %p307, %p308
      %p310 = pneg %p309
      // Predicated region
      $region45: #{_decoder_pallas.1} parent=5 // pred_check
        _
      $region46: #{_decoder_pallas.1} parent=5 // pred_check_branch
        %312 = sbr.rel (%p309) target = $region48
      $region47: #{_decoder_pallas.1} parent=5 // pred_region
        %s313 = ssub.s32 %s18, 1
        // Predicated region
        $region49: #{_decoder_pallas.1} parent=47 // pred_check
          %p314 = pneg %p77
        $region50: #{_decoder_pallas.1} parent=47 // pred_check_branch
          %316 = sbr.rel (%p314) target = $region52
        $region51: #{_decoder_pallas.1} parent=47 // pred_region
          %318 = dma.done [#allocation3], 1024
        $region52: #{_decoder_pallas.1} parent=47 // pred_fallthru
          _
        // Predicated region
        $region53: #{_decoder_pallas.1} parent=47 // pred_check
          %p319 = pneg %p119
        $region54: #{_decoder_pallas.1} parent=47 // pred_check_branch
          %321 = sbr.rel (%p319) target = $region56
        $region55: #{_decoder_pallas.1} parent=47 // pred_region
          %323 = dma.done [#allocation6], 1024
        $region56: #{_decoder_pallas.1} parent=47 // pred_fallthru
          _
        %s324 = sand.u32 %s23, 1
        %s325 = scalar_lea.sflag [#allocation3], %s324
        %s326 = sand.u32 %s153, 1
        %s327 = smul.addr %s326, 64
        %s328 = scalar_lea.vmem [#allocation7], %s327
        // Predicated region
        $region57: #{_decoder_pallas.1} parent=47 // pred_check
          %p329 = pneg %p166
        $region58: #{_decoder_pallas.1} parent=47 // pred_check_branch
          %331 = sbr.rel (%p329) target = $region60
        $region59: #{_decoder_pallas.1} parent=47 // pred_region
          %333 = dma.done %s325, 1024
        $region60: #{_decoder_pallas.1} parent=47 // pred_fallthru
          _
        %p334 = scmp.lt.s32.totalorder %s28, 2
        %s335 = scalar_select %p334, %s28, 2
        %s336 = smul.addr %s335, 4
        %s337 = scalar_lea.vmem %s0, %s336
        %p338 = pneg %p56
        %p339 = pneg %p53
        %p340 = pneg %p77
        %p341 = pneg %p74
        %p342 = pneg %p98
        %p343 = pneg %p95
        %p344 = pneg %p119
        %p345 = pneg %p116
        %p346 = pneg %p140
        %p347 = pneg %p137
        %s348 = sand.u32 %s23, 1
        %s349 = scalar_lea.sflag [#allocation3], %s348
        %s350 = sand.u32 %s153, 1
        %s351 = smul.addr %s350, 64
        %s352 = scalar_lea.vmem [#allocation7], %s351
        %p353 = pneg %p166
        %p354 = pneg %p163
        %p355 = scmp.lt.s32.totalorder %s27, 2
        %s356 = scalar_select %p355, %s27, 2
        %s357 = scalar_lea.vmem %s6, %s356
        %p358 = pneg %p192
        %p359 = pneg %p189
        %p360 = pneg %p220
        %p361 = pneg %p217
        %s362 = sand.u32 %s207, 1
        %s363 = scalar_lea.sflag [#allocation4], %s362
        %s364 = sand.u32 %s207, 1
        %s365 = smul.addr %s364, 8
        %s366 = scalar_lea.vmem [#allocation8], %s365
        %p367 = scmp.lt.s32.totalorder %s28, 2
        %s368 = scalar_select %p367, %s28, 2
        %s369 = smul.addr %s368, 4
        %s370 = scalar_lea.vmem %s0, %s369
        %p371 = scmp.lt.s32.totalorder %s27, 2
        %s372 = scalar_select %p371, %s27, 2
        %s373 = scalar_lea.vmem %s6, %s372
        %v374 = vld [vmem:[%s370] sm:$0xf]
        %v375 = vld [vmem:[#allocation2] sm:$0xf]
        %v376 = vld [vmem:[#allocation2 + $0x4] sm:$0xf]
        %v377 = vld [vmem:[#allocation2 + $0x8] sm:$0xf]
        %v378 = vld [vmem:[#allocation2 + $0xc] sm:$0xf]
        %v379 = vld [vmem:[#allocation2 + $0x10] sm:$0xf]
        %v380 = vld [vmem:[#allocation2 + $0x14] sm:$0xf]
        %v381 = vld [vmem:[#allocation2 + $0x18] sm:$0xf]
        %v382 = vld [vmem:[#allocation2 + $0x1c] sm:$0xf]
        %v383 = vld [vmem:[#allocation2 + $0x20] sm:$0xf]
        %v384 = vld [vmem:[#allocation2 + $0x24] sm:$0xf]
        %v385 = vld [vmem:[#allocation2 + $0x28] sm:$0xf]
        %v386 = vld [vmem:[#allocation2 + $0x2c] sm:$0xf]
        %v387 = vld [vmem:[#allocation2 + $0x30] sm:$0xf]
        %v388 = vld [vmem:[#allocation2 + $0x34] sm:$0xf]
        %v389 = vld [vmem:[#allocation2 + $0x38] sm:$0xf]
        %v390 = vld [vmem:[#allocation2 + $0x3c] sm:$0xf]
        %v391 = vld [vmem:[%s2] sm:$0x1]
        %v393 = vperm.slane %v391, 0
        %v411 = vunpack.c.l.b16 %v375
        %v412 = vunpack.c.l.b16 %v376
        %v413 = vunpack.c.l.b16 %v377
        %v414 = vunpack.c.l.b16 %v378
        %v415 = vunpack.c.l.b16 %v379
        %v416 = vunpack.c.l.b16 %v380
        %v417 = vunpack.c.l.b16 %v381
        %v418 = vunpack.c.l.b16 %v382
        %v419 = vunpack.c.l.b16 %v383
        %v420 = vunpack.c.l.b16 %v384
        %v421 = vunpack.c.l.b16 %v385
        %v422 = vunpack.c.l.b16 %v386
        %v423 = vunpack.c.l.b16 %v387
        %v424 = vunpack.c.l.b16 %v388
        %v425 = vunpack.c.l.b16 %v389
        %v426 = vunpack.c.l.b16 %v390
        %v427 = vpack.c.b16 %v412, %v411
        %v428 = vpack.c.b16 %v414, %v413
        %v429 = vpack.c.b16 %v416, %v415
        %v430 = vpack.c.b16 %v418, %v417
        %v431 = vpack.c.b16 %v420, %v419
        %v432 = vpack.c.b16 %v422, %v421
        %v433 = vpack.c.b16 %v424, %v423
        %v434 = vpack.c.b16 %v426, %v425
        %443 = vmatpush.bf16.msra.mxu0 %v434
        %444 = vmatpush.bf16.msra.mxu0 %v433
        %445 = vmatpush.bf16.msra.mxu0 %v432
        %446 = vmatpush.bf16.msra.mxu0 %v431
        %447 = vmatpush.bf16.msra.mxu0 %v430
        %448 = vmatpush.bf16.msra.mxu0 %v429
        %449 = vmatpush.bf16.msra.mxu0 %v428
        %450 = vmatpush.bf16.msra.mxu0 %v427
        %451 = vmatmul.bf16.gmra.mxu0 %v374
        %v452 = vpop.f32.mrf.mxu0
        %v453 = vadd.f32 %v393, %v452
        %v454 = vpop.f32.mrf.mxu0
        %455 = vdwg.mxu0
        %v456 = vtanh.pop %v453
        %v457 = vpack.c.bf16 %v456, %v456
        %v458 = vld [vmem:[#allocation5] sm:$0xf]
        %v459 = vld [vmem:[#allocation5 + $0x4] sm:$0xf]
        %v460 = vld [vmem:[#allocation5 + $0x8] sm:$0xf]
        %v461 = vld [vmem:[#allocation5 + $0xc] sm:$0xf]
        %v462 = vld [vmem:[#allocation5 + $0x10] sm:$0xf]
        %v463 = vld [vmem:[#allocation5 + $0x14] sm:$0xf]
        %v464 = vld [vmem:[#allocation5 + $0x18] sm:$0xf]
        %v465 = vld [vmem:[#allocation5 + $0x1c] sm:$0xf]
        %v466 = vld [vmem:[#allocation5 + $0x20] sm:$0xf]
        %v467 = vld [vmem:[#allocation5 + $0x24] sm:$0xf]
        %v468 = vld [vmem:[#allocation5 + $0x28] sm:$0xf]
        %v469 = vld [vmem:[#allocation5 + $0x2c] sm:$0xf]
        %v470 = vld [vmem:[#allocation5 + $0x30] sm:$0xf]
        %v471 = vld [vmem:[#allocation5 + $0x34] sm:$0xf]
        %v472 = vld [vmem:[#allocation5 + $0x38] sm:$0xf]
        %v473 = vld [vmem:[#allocation5 + $0x3c] sm:$0xf]
        %v474 = vld [vmem:[%s4] sm:$0x1]
        %v476 = vperm.slane %v474, 0
        %v494 = vunpack.c.l.b16 %v458
        %v495 = vunpack.c.l.b16 %v459
        %v496 = vunpack.c.l.b16 %v460
        %v497 = vunpack.c.l.b16 %v461
        %v498 = vunpack.c.l.b16 %v462
        %v499 = vunpack.c.l.b16 %v463
        %v500 = vunpack.c.l.b16 %v464
        %v501 = vunpack.c.l.b16 %v465
        %v502 = vunpack.c.l.b16 %v466
        %v503 = vunpack.c.l.b16 %v467
        %v504 = vunpack.c.l.b16 %v468
        %v505 = vunpack.c.l.b16 %v469
        %v506 = vunpack.c.l.b16 %v470
        %v507 = vunpack.c.l.b16 %v471
        %v508 = vunpack.c.l.b16 %v472
        %v509 = vunpack.c.l.b16 %v473
        %v510 = vpack.c.b16 %v495, %v494
        %v511 = vpack.c.b16 %v497, %v496
        %v512 = vpack.c.b16 %v499, %v498
        %v513 = vpack.c.b16 %v501, %v500
        %v514 = vpack.c.b16 %v503, %v502
        %v515 = vpack.c.b16 %v505, %v504
        %v516 = vpack.c.b16 %v507, %v506
        %v517 = vpack.c.b16 %v509, %v508
        %526 = vmatpush.bf16.msra.mxu0 %v517
        %527 = vmatpush.bf16.msra.mxu0 %v516
        %528 = vmatpush.bf16.msra.mxu0 %v515
        %529 = vmatpush.bf16.msra.mxu0 %v514
        %530 = vmatpush.bf16.msra.mxu0 %v513
        %531 = vmatpush.bf16.msra.mxu0 %v512
        %532 = vmatpush.bf16.msra.mxu0 %v511
        %533 = vmatpush.bf16.msra.mxu0 %v510
        %534 = vmatmul.bf16.gmra.mxu0 %v457
        %v535 = vpop.f32.mrf.mxu0
        %v536 = vadd.f32 %v476, %v535
        %v537 = vpop.f32.mrf.mxu0
        %538 = vdwg.mxu0
        %v539 = vtanh.pop %v536
        %v540 = vpack.c.bf16 %v539, %v539
        %v541 = vld [vmem:[%s328] sm:$0xf]
        %v542 = vld [vmem:[%s328 + $0x4] sm:$0xf]
        %v543 = vld [vmem:[%s328 + $0x8] sm:$0xf]
        %v544 = vld [vmem:[%s328 + $0xc] sm:$0xf]
        %v545 = vld [vmem:[%s328 + $0x10] sm:$0xf]
        %v546 = vld [vmem:[%s328 + $0x14] sm:$0xf]
        %v547 = vld [vmem:[%s328 + $0x18] sm:$0xf]
        %v548 = vld [vmem:[%s328 + $0x1c] sm:$0xf]
        %v549 = vld [vmem:[%s328 + $0x20] sm:$0xf]
        %v550 = vld [vmem:[%s328 + $0x24] sm:$0xf]
        %v551 = vld [vmem:[%s328 + $0x28] sm:$0xf]
        %v552 = vld [vmem:[%s328 + $0x2c] sm:$0xf]
        %v553 = vld [vmem:[%s328 + $0x30] sm:$0xf]
        %v554 = vld [vmem:[%s328 + $0x34] sm:$0xf]
        %v555 = vld [vmem:[%s328 + $0x38] sm:$0xf]
        %v556 = vld [vmem:[%s328 + $0x3c] sm:$0xf]
        %v557 = vld [vmem:[%s373] sm:$0x1]
        %v559 = vperm.slane %v557, 0
        %v577 = vunpack.c.l.b16 %v541
        %v578 = vunpack.c.l.b16 %v542
        %v579 = vunpack.c.l.b16 %v543
        %v580 = vunpack.c.l.b16 %v544
        %v581 = vunpack.c.l.b16 %v545
        %v582 = vunpack.c.l.b16 %v546
        %v583 = vunpack.c.l.b16 %v547
        %v584 = vunpack.c.l.b16 %v548
        %v585 = vunpack.c.l.b16 %v549
        %v586 = vunpack.c.l.b16 %v550
        %v587 = vunpack.c.l.b16 %v551
        %v588 = vunpack.c.l.b16 %v552
        %v589 = vunpack.c.l.b16 %v553
        %v590 = vunpack.c.l.b16 %v554
        %v591 = vunpack.c.l.b16 %v555
        %v592 = vunpack.c.l.b16 %v556
        %v593 = vpack.c.b16 %v578, %v577
        %v594 = vpack.c.b16 %v580, %v579
        %v595 = vpack.c.b16 %v582, %v581
        %v596 = vpack.c.b16 %v584, %v583
        %v597 = vpack.c.b16 %v586, %v585
        %v598 = vpack.c.b16 %v588, %v587
        %v599 = vpack.c.b16 %v590, %v589
        %v600 = vpack.c.b16 %v592, %v591
        %609 = vmatpush.bf16.msra.mxu0 %v600
        %610 = vmatpush.bf16.msra.mxu0 %v599
        %611 = vmatpush.bf16.msra.mxu0 %v598
        %612 = vmatpush.bf16.msra.mxu0 %v597
        %613 = vmatpush.bf16.msra.mxu0 %v596
        %614 = vmatpush.bf16.msra.mxu0 %v595
        %615 = vmatpush.bf16.msra.mxu0 %v594
        %616 = vmatpush.bf16.msra.mxu0 %v593
        %617 = vmatmul.bf16.gmra.mxu0 %v540
        %v618 = vpop.f32.mrf.mxu0
        %v619 = vadd.f32 %v559, %v618
        %v620 = vpop.f32.mrf.mxu0
        %621 = vdwg.mxu0
        %v622 = vtanh.pop %v619
        %623 = vst [vmem:[%s366] sm:$0xff] %v622
        %s624 = sand.u32 %s207, 1
        %s625 = scalar_lea.sflag [#allocation4], %s624
        %s626 = sand.u32 %s207, 1
        %s627 = smul.addr %s626, 8
        %s628 = scalar_lea.vmem [#allocation8], %s627
        // Predicated region
        $region61: #{_decoder_pallas.1} parent=47 // pred_check
          %p629 = pneg %p217
        $region62: #{_decoder_pallas.1} parent=47 // pred_check_branch
          %631 = sbr.rel (%p629) target = $region64
        $region63: #{_decoder_pallas.1} parent=47 // pred_region
          %633 = vsyncadd %s625, 0
          %s634 = smul.addr %s28, 3
          %s635 = sadd.s32 %s27, %s634
          %s636 = smul.addr %s635, 8
          %s637 = scalar_lea.hbm %s7, %s636
          %s639 = sshll.u32 %s628, 4
          %s640 = int_to_ptr.vmem [resolvable:$true] %s639
          %s641 = sshll.u32 %s637, 4
          %s642 = int_to_ptr.hbm [resolvable:$true] %s641
          %644 = dma.vmem_to_hbm [thread:$0]  %s640, 128, %s642, %s625
        $region64: #{_decoder_pallas.1} parent=47 // pred_fallthru
          _
      $region48: #{_decoder_pallas.1} parent=5 // pred_fallthru
        _
      %p645 = scmp.le.s32.totalorder 2, %s18
      // Predicated region
      $region65: #{_decoder_pallas.1} parent=5 // pred_check
        %p646 = pneg %p645
      $region66: #{_decoder_pallas.1} parent=5 // pred_check_branch
        %648 = sbr.rel (%p646) target = $region68
      $region67: #{_decoder_pallas.1} parent=5 // pred_region
        %s649 = ssub.s32 %s18, 2
        // Predicated region
        $region69: #{_decoder_pallas.1} parent=67 // pred_check
          %p650 = pneg %p223
        $region70: #{_decoder_pallas.1} parent=67 // pred_check_branch
          %652 = sbr.rel (%p650) target = $region72
        $region71: #{_decoder_pallas.1} parent=67 // pred_region
          %s653 = sand.u32 %s208, 1
          %s654 = scalar_lea.sflag [#allocation4], %s653
          %s655 = sand.u32 %s208, 1
          %s656 = smul.addr %s655, 8
          %s657 = scalar_lea.vmem [#allocation8], %s656
          %659 = dma.done %s654, 128
        $region72: #{_decoder_pallas.1} parent=67 // pred_fallthru
          _
      $region68: #{_decoder_pallas.1} parent=5 // pred_fallthru
        _
    $region6: #{_decoder_pallas.1} parent=1 // loop_footer
      %s22 = sadd.s32 1, %s18
    $region7: #{_decoder_pallas.1} parent=1 // loop_footer_branch
      %17 = sbr.rel target = $region3
    $region8: #{_decoder_pallas.1} parent=1 // loop_exit
      _
    %660 = vsyncpa [#allocation3], 1
    %s661 = scalar_lea.sflag [#allocation3], 1
    %662 = vsyncpa %s661, 1
    %663 = vsyncpa [#allocation6], 1
    %664 = vsyncpa [#allocation4], 1
    %s665 = scalar_lea.sflag [#allocation4], 1
    %666 = vsyncpa %s665, 1

</llo_original>
